<compile_context>
chip_gen: v7x
topology: tpu7x:2x2x1
jax: 0.10.0
libtpu: 0.0.40
codegen_flags: <defaults>
</compile_context>

<pallas_src>
import functools

import jax
import jax.numpy as jnp
from jax import lax
from jax.experimental import pallas as pl
from jax.experimental.pallas import tpu as pltpu

EPS = 1e-5
LANE_PAD = 128            # padded output lanes for the final Linear
WHOLE_BATCH_MAX_B = 1024  # above this, switch to the batch-tiled phase grid


# ---------------------------------------------------------------------------
# Whole-batch kernel (small B): everything resident, centered two-pass BN.
# ---------------------------------------------------------------------------
def _bn_relu_centered(h, gamma, beta, inv_b):
    """Training-mode BatchNorm1d + ReLU, fused scale/offset, centered variance."""
    mean = jnp.sum(h, axis=0, keepdims=True) * inv_b      # (1, N) exact f32 sum
    d = h - mean
    var = jnp.sum(d * d, axis=0, keepdims=True) * inv_b   # biased batch variance
    a = gamma * lax.rsqrt(var + EPS)                       # EUP rsqrt (free slot)
    return jnp.maximum(d * a + beta, 0.0)


def disc_whole_kernel(x_ref, w1_ref, w2_ref, w3_ref, w4_ref, vec_ref, o_ref,
                      *, inv_b):
    bf16 = jnp.bfloat16
    x = x_ref[...]  # (B, 512) bf16 (cast at the wrapper boundary)

    # Layer 1: Linear(512,256) [bias dropped: cancelled by train-mode BN] + BN + ReLU
    h = jnp.dot(x, w1_ref[...], preferred_element_type=jnp.float32)
    h = _bn_relu_centered(h, vec_ref[0:1, :], vec_ref[1:2, :], inv_b)

    # Layer 2: Linear(256,256) + BN + ReLU
    h = jnp.dot(h.astype(bf16), w2_ref[...], preferred_element_type=jnp.float32)
    h = _bn_relu_centered(h, vec_ref[2:3, :], vec_ref[3:4, :], inv_b)

    # Layer 3: Linear(256,128) + BN + ReLU
    h = jnp.dot(h.astype(bf16), w3_ref[...], preferred_element_type=jnp.float32)
    h = _bn_relu_centered(h, vec_ref[4:5, :128], vec_ref[5:6, :128], inv_b)

    # Layer 4: Linear(128, out_dim) — lane-padded to 128 outputs, bias kept.
    out = jnp.dot(h.astype(bf16), w4_ref[...], preferred_element_type=jnp.float32)
    o_ref[...] = out + vec_ref[6:7, :LANE_PAD]


# ---------------------------------------------------------------------------
# Batch-tiled phase-grid kernel (large B): grid = (4 phases, n_tiles).
#   phase 0: h1 = x_tile @ W1,        accumulate s1/s2 (layer-1 stats)
#   phase 1: BN1 affine+ReLU, @ W2,   accumulate s1/s2 (layer-2 stats)
#   phase 2: BN2 affine+ReLU, @ W3,   accumulate s1/s2 (layer-3 stats)
#   phase 3: BN3 affine+ReLU, @ W4p + b4 -> output tile
# Per-phase BN scale/shift is finalized once at tile 0 of the *next* phase.
# ---------------------------------------------------------------------------
def disc_tiled_kernel(x_ref, w1_ref, w2_ref, w3_ref, w4_ref, vec_ref, o_ref,
                      hbuf, s1, s2, ac, *, Bt, B_real, inv_b):
    bf16 = jnp.bfloat16
    p = pl.program_id(0)   # phase (layer)
    i = pl.program_id(1)   # batch tile

    row0 = pl.multiple_of(i * Bt, Bt)
    rows = pl.ds(row0, Bt)

    # Row-validity mask: padded rows must not contribute to the batch stats.
    gids = lax.broadcasted_iota(jnp.int32, (Bt, 1), 0) + i * Bt
    valid = gids < B_real

    def accumulate(h, width):
        hm = jnp.where(valid, h, 0.0)
        s1[0:1, :width] += jnp.sum(hm, axis=0, keepdims=True)
        s2[0:1, :width] += jnp.sum(hm * hm, axis=0, keepdims=True)

    def finalize(g_row, width):
        # Fold the previous layer's batch stats into a fused scale a / shift c,
        # then reset the accumulators for this phase's layer.
        mean = s1[0:1, :width] * inv_b
        var = s2[0:1, :width] * inv_b - mean * mean        # biased batch variance
        a = vec_ref[g_row:g_row + 1, :width] * lax.rsqrt(var + EPS)
        c = vec_ref[g_row + 1:g_row + 2, :width] - mean * a
        ac[0:1, :width] = a
        ac[1:2, :width] = c
        s1[...] = jnp.zeros_like(s1)
        s2[...] = jnp.zeros_like(s2)

    @pl.when(p == 0)
    def _():
        @pl.when(i == 0)
        def _():
            s1[...] = jnp.zeros_like(s1)
            s2[...] = jnp.zeros_like(s2)
        h = jnp.dot(x_ref[...], w1_ref[...], preferred_element_type=jnp.float32)
        accumulate(h, 256)
        hbuf[rows, :] = h

    @pl.when(p == 1)
    def _():
        @pl.when(i == 0)
        def _():
            finalize(0, 256)               # BN1 (gamma/beta in vecs rows 0,1)
        act = jnp.maximum(hbuf[rows, :] * ac[0:1, :] + ac[1:2, :], 0.0)
        h = jnp.dot(act.astype(bf16), w2_ref[...], preferred_element_type=jnp.float32)
        accumulate(h, 256)
        hbuf[rows, :] = h

    @pl.when(p == 2)
    def _():
        @pl.when(i == 0)
        def _():
            finalize(2, 256)               # BN2 (rows 2,3)
        act = jnp.maximum(hbuf[rows, :] * ac[0:1, :] + ac[1:2, :], 0.0)
        h = jnp.dot(act.astype(bf16), w3_ref[...], preferred_element_type=jnp.float32)
        accumulate(h, 128)
        hbuf[rows, 0:128] = h

    @pl.when(p == 3)
    def _():
        @pl.when(i == 0)
        def _():
            finalize(4, 128)               # BN3 (rows 4,5, first 128 lanes)
        act = jnp.maximum(hbuf[rows, 0:128] * ac[0:1, 0:128] + ac[1:2, 0:128], 0.0)
        out = jnp.dot(act.astype(bf16), w4_ref[...], preferred_element_type=jnp.float32)
        o_ref[...] = out + vec_ref[6:7, 0:LANE_PAD]


# ---------------------------------------------------------------------------
# Wrapper
# ---------------------------------------------------------------------------
def osnet_ain_disc_forward(x, packed, out_dim, *, batch_tile=None, force_tiled=False):
    """x: (B, 512) float.  packed: (w1, w2, w3, w4_padded, vecs) from pack_params."""
    assert out_dim <= LANE_PAD, "LANE_PAD=128 assumes out_dim <= 128"
    B = x.shape[0]
    w1, w2, w3, w4p, vecs = packed

    # Boundary cast: halves the dominant x HBM->VMEM DMA, zero numeric change
    # (the kernel already feeds bf16 into the layer-1 MXU dot).
    x = x.astype(jnp.bfloat16)

    vmem = pl.BlockSpec(memory_space=pltpu.MemorySpace.VMEM)
    weight_bytes = (w1.size + w2.size + w3.size + w4p.size) * 2 + vecs.size * 4
    matmul_flops_per_row = 2 * (512 * 256 + 256 * 256 + 256 * 128 + 128 * LANE_PAD)

    if not (force_tiled or B > WHOLE_BATCH_MAX_B):
        # ---- whole-batch path (small B: launch/DMA-overhead bound anyway) ----
        kernel = functools.partial(disc_whole_kernel, inv_b=1.0 / B)
        cost = pl.CostEstimate(
            flops=B * matmul_flops_per_row + 10 * B * (256 + 256 + 128),
            transcendentals=256 + 256 + 128,
            bytes_accessed=x.size * 2 + weight_bytes + B * LANE_PAD * 4,
        )
        out = pl.pallas_call(
            kernel,
            out_shape=jax.ShapeDtypeStruct((B, LANE_PAD), jnp.float32),
            in_specs=[vmem] * 6,
            out_specs=vmem,
            compiler_params=pltpu.CompilerParams(vmem_limit_bytes=32 * 1024 * 1024),
            cost_estimate=cost,
        )(x, w1, w2, w3, w4p, vecs)
        return out[:, :out_dim]

    # ---- batch-tiled phase-grid path ----
    Bt = int(batch_tile) if batch_tile is not None else 256
    Bt = max(16, (Bt // 16) * 16)          # bf16 sublane packing -> multiple of 16
    n_tiles = pl.cdiv(B, Bt)
    B_pad = n_tiles * Bt
    if B_pad != B:
        x = jnp.zeros((B_pad, x.shape[1]), x.dtype).at[:B, :].set(x)

    kernel = functools.partial(disc_tiled_kernel, Bt=Bt, B_real=B, inv_b=1.0 / B)

    hbuf_bytes = B_pad * 256 * 4
    # Keep headroom and cap for v7x's 64 MiB VMEM per TensorCore.
    vmem_limit = min(56 * 1024 * 1024,
                     max(32 * 1024 * 1024, hbuf_bytes + 8 * 1024 * 1024))
    cost = pl.CostEstimate(
        flops=B_pad * matmul_flops_per_row + 12 * B_pad * (256 + 256 + 128),
        transcendentals=256 + 256 + 128,
        bytes_accessed=x.size * 2 + weight_bytes + B_pad * LANE_PAD * 4,
    )

    grid_spec = pltpu.PrefetchScalarGridSpec(
        num_scalar_prefetch=0,
        grid=(4, n_tiles),
        in_specs=[
            # x only matters in phase 0; pin to block 0 elsewhere -> no extra DMA.
            pl.BlockSpec((Bt, 512), lambda p, i: (jnp.where(p == 0, i, 0), 0)),
            # Weights / packed vectors: whole array, constant block -> resident.
            pl.BlockSpec((512, 256), lambda p, i: (0, 0)),
            pl.BlockSpec((256, 256), lambda p, i: (0, 0)),
            pl.BlockSpec((256, 128), lambda p, i: (0, 0)),
            pl.BlockSpec((128, LANE_PAD), lambda p, i: (0, 0)),
            pl.BlockSpec((8, 256), lambda p, i: (0, 0)),
        ],
        # Output is only produced in phase 3; pin to block 0 in earlier phases.
        out_specs=pl.BlockSpec((Bt, LANE_PAD),
                               lambda p, i: (jnp.where(p == 3, i, 0), 0)),
        scratch_shapes=[
            pltpu.VMEM((B_pad, 256), jnp.float32),  # whole-batch activations
            pltpu.VMEM((1, 256), jnp.float32),      # s1 (per-feature sum)
            pltpu.VMEM((1, 256), jnp.float32),      # s2 (per-feature sum of squares)
            pltpu.VMEM((2, 256), jnp.float32),      # fused BN scale / shift
        ],
    )

    out = pl.pallas_call(
        kernel,
        out_shape=jax.ShapeDtypeStruct((B_pad, LANE_PAD), jnp.float32),
        grid_spec=grid_spec,
        compiler_params=pltpu.CompilerParams(
            dimension_semantics=("arbitrary", "arbitrary"),
            vmem_limit_bytes=vmem_limit,
        ),
        cost_estimate=cost,
    )(x, w1, w2, w3, w4p, vecs)
    return out[:B, :out_dim]


# ---------------------------------------------------------------------------
# Parameter construction / packing / reference
# ---------------------------------------------------------------------------
def init_params(key, out_dim):
    """Deterministic init matching the PyTorch module's parameter shapes.

    Linear weights are stored transposed as (in, out) in bfloat16 (the kernel's
    storage precision); biases / BN gamma / BN beta are 1-D f32 vectors.
    """
    dims = [(512, 256), (256, 256), (256, 128), (128, out_dim)]
    params = []
    keys = jax.random.split(key, 8)
    ki = 0
    for li, (fin, fout) in enumerate(dims):
        bound = 1.0 / float(fin) ** 0.5
        w = jax.random.uniform(keys[ki], (fin, fout), jnp.float32, -bound, bound)
        ki += 1
        b = jax.random.uniform(keys[ki], (fout,), jnp.float32, -bound, bound)
        ki += 1
        params.extend([w.astype(jnp.bfloat16), b])
        if li < 3:  # BN after the first three linears
            params.extend([jnp.ones((fout,), jnp.float32),
                           jnp.zeros((fout,), jnp.float32)])
    return params


def pack_params(params, out_dim):
    """Repack PyTorch-shaped params into the kernel's 6-operand layout."""
    assert out_dim <= LANE_PAD, "LANE_PAD=128 assumes out_dim <= 128"
    (w1, b1, g1, be1, w2, b2, g2, be2, w3, b3, g3, be3, w4, b4) = params
    del b1, b2, b3  # cancelled exactly by training-mode BatchNorm -> dropped

    # Lane-pad the final layer to 128 output lanes (zeros beyond out_dim).
    w4p = jnp.zeros((w4.shape[0], LANE_PAD), w4.dtype).at[:, :out_dim].set(w4)
    b4p = jnp.zeros((LANE_PAD,), jnp.float32).at[:out_dim].set(b4)

    # Pack all remaining small per-feature vectors into one (8, 256) f32 slab.
    vecs = jnp.zeros((8, 256), jnp.float32)
    vecs = vecs.at[0, :].set(g1)
    vecs = vecs.at[1, :].set(be1)
    vecs = vecs.at[2, :].set(g2)
    vecs = vecs.at[3, :].set(be2)
    vecs = vecs.at[4, :128].set(g3)
    vecs = vecs.at[5, :128].set(be3)
    vecs = vecs.at[6, :LANE_PAD].set(b4p)
    return (w1, w2, w3, w4p, vecs)


def reference_forward(x, params):
    """Pure-JAX reference mirroring the PyTorch module (training-mode BN).

    Uses the same bf16 weight storage / bf16-input, f32-accumulate matmuls as
    the kernel, but keeps the textbook two-pass BN form INCLUDING the linear
    biases b1-b3 — validating the kernel's bias-drop and fused-BN algebra.
    """
    (w1, b1, g1, be1, w2, b2, g2, be2, w3, b3, g3, be3, w4, b4) = params

    def dot(a, w):
        return jnp.dot(a.astype(jnp.bfloat16), w,
                       preferred_element_type=jnp.float32)

    def bn_relu(h, g, be):
        m = jnp.mean(h, axis=0, keepdims=True)
        v = jnp.mean((h - m) ** 2, axis=0, keepdims=True)
        return jnp.maximum((h - m) / jnp.sqrt(v + EPS) * g + be, 0.0)

    h = bn_relu(dot(x, w1) + b1, g1, be1)
    h = bn_relu(dot(h, w2) + b2, g2, be2)
    h = bn_relu(dot(h, w3) + b3, g3, be3)
    return dot(h, w4) + b4


if __name__ == "__main__":
    key = jax.random.PRNGKey(0)
    k_x, k_x2, k_p = jax.random.split(key, 3)

    OUT_DIM = 8
    params = init_params(k_p, OUT_DIM)
    packed = pack_params(params, OUT_DIM)

    # --- small batch: whole-batch path ---
    B = 8
    x = jax.random.normal(k_x, (B, 512), jnp.float32)
    out = jax.block_until_ready(osnet_ain_disc_forward(x, packed, OUT_DIM))
    ref = reference_forward(x, params)
    assert out.shape == (B, OUT_DIM)
    assert jnp.allclose(out, ref, atol=2e-3, rtol=2e-3), "whole-batch mismatch"

    # --- batch-tiled phase-grid path (exercises padding + masked batch stats) ---
    B2 = 40
    x2 = jax.random.normal(k_x2, (B2, 512), jnp.float32)
    out2 = jax.block_until_ready(
        osnet_ain_disc_forward(x2, packed, OUT_DIM, batch_tile=16, force_tiled=True))
    ref2 = reference_forward(x2, params)
    assert out2.shape == (B2, OUT_DIM)
    assert jnp.allclose(out2, ref2, atol=2e-3, rtol=2e-3), "tiled-path mismatch"

    print("KERNEL_OK")
</pallas_src>

<mosaic_0001>
module attributes {stable_mosaic.version = 11 : i64} {
  func.func @disc_whole_kernel(%arg0: memref<8x512xbf16, #tpu.memory_space<vmem>>, %arg1: memref<512x256xbf16, #tpu.memory_space<vmem>>, %arg2: memref<256x256xbf16, #tpu.memory_space<vmem>>, %arg3: memref<256x128xbf16, #tpu.memory_space<vmem>>, %arg4: memref<128x128xbf16, #tpu.memory_space<vmem>>, %arg5: memref<8x256xf32, #tpu.memory_space<vmem>>, %arg6: memref<8x128xf32, #tpu.memory_space<vmem>>) attributes {dimension_semantics = [], scalar_prefetch = 0 : i64, scratch_operands = 0 : i64, tpu.core_type = #tpu.core_type<tc>} {
    %c0 = arith.constant 0 : index
    %c0_0 = arith.constant 0 : index
    %0 = vector.load %arg0[%c0, %c0_0] : memref<8x512xbf16, #tpu.memory_space<vmem>>, vector<8x512xbf16>
    %c0_1 = arith.constant 0 : index
    %c0_2 = arith.constant 0 : index
    %1 = vector.load %arg1[%c0_1, %c0_2] : memref<512x256xbf16, #tpu.memory_space<vmem>>, vector<512x256xbf16>
    %cst = arith.constant dense<0.000000e+00> : vector<8x256xf32>
    %2 = tpu.matmul %0, %1, %cst {dimension_numbers = #tpu.dot_dimension_numbers<[1], [0], [0], [1], [0, 0, 1, 1], [], []>} : vector<8x512xbf16>, vector<512x256xbf16>, vector<8x256xf32> -> vector<8x256xf32>
    %c0_3 = arith.constant 0 : index
    %c0_4 = arith.constant 0 : index
    %3 = vector.load %arg5[%c0_3, %c0_4] : memref<8x256xf32, #tpu.memory_space<vmem>>, vector<1x256xf32>
    %c1 = arith.constant 1 : index
    %c0_5 = arith.constant 0 : index
    %4 = vector.load %arg5[%c1, %c0_5] : memref<8x256xf32, #tpu.memory_space<vmem>>, vector<1x256xf32>
    %cst_6 = arith.constant dense<0.000000e+00> : vector<256xf32>
    %5 = vector.multi_reduction <add>, %2, %cst_6 [0] : vector<8x256xf32> to vector<256xf32>
    %6 = vector.shape_cast %5 : vector<256xf32> to vector<1x256xf32>
    %cst_7 = arith.constant 1.250000e-01 : f32
    %7 = vector.broadcast %cst_7 : f32 to vector<1x256xf32>
    %8 = arith.mulf %6, %7 : vector<1x256xf32>
    %9 = vector.broadcast %8 : vector<1x256xf32> to vector<8x256xf32>
    %10 = arith.subf %2, %9 : vector<8x256xf32>
    %11 = arith.mulf %10, %10 : vector<8x256xf32>
    %cst_8 = arith.constant dense<0.000000e+00> : vector<256xf32>
    %12 = vector.multi_reduction <add>, %11, %cst_8 [0] : vector<8x256xf32> to vector<256xf32>
    %13 = vector.shape_cast %12 : vector<256xf32> to vector<1x256xf32>
    %cst_9 = arith.constant 1.250000e-01 : f32
    %14 = vector.broadcast %cst_9 : f32 to vector<1x256xf32>
    %15 = arith.mulf %13, %14 : vector<1x256xf32>
    %cst_10 = arith.constant 9.99999974E-6 : f32
    %16 = vector.broadcast %cst_10 : f32 to vector<1x256xf32>
    %17 = arith.addf %15, %16 : vector<1x256xf32>
    %18 = math.rsqrt %17 : vector<1x256xf32>
    %19 = arith.mulf %3, %18 : vector<1x256xf32>
    %20 = vector.broadcast %19 : vector<1x256xf32> to vector<8x256xf32>
    %21 = arith.mulf %10, %20 : vector<8x256xf32>
    %22 = vector.broadcast %4 : vector<1x256xf32> to vector<8x256xf32>
    %23 = arith.addf %21, %22 : vector<8x256xf32>
    %cst_11 = arith.constant 0.000000e+00 : f32
    %24 = vector.broadcast %cst_11 : f32 to vector<8x256xf32>
    %25 = arith.maximumf %23, %24 : vector<8x256xf32>
    %26 = arith.truncf %25 : vector<8x256xf32> to vector<8x256xbf16>
    %c0_12 = arith.constant 0 : index
    %c0_13 = arith.constant 0 : index
    %27 = vector.load %arg2[%c0_12, %c0_13] : memref<256x256xbf16, #tpu.memory_space<vmem>>, vector<256x256xbf16>
    %cst_14 = arith.constant dense<0.000000e+00> : vector<8x256xf32>
    %28 = tpu.matmul %26, %27, %cst_14 {dimension_numbers = #tpu.dot_dimension_numbers<[1], [0], [0], [1], [0, 0, 1, 1], [], []>} : vector<8x256xbf16>, vector<256x256xbf16>, vector<8x256xf32> -> vector<8x256xf32>
    %c2 = arith.constant 2 : index
    %c0_15 = arith.constant 0 : index
    %29 = vector.load %arg5[%c2, %c0_15] : memref<8x256xf32, #tpu.memory_space<vmem>>, vector<1x256xf32>
    %c3 = arith.constant 3 : index
    %c0_16 = arith.constant 0 : index
    %30 = vector.load %arg5[%c3, %c0_16] : memref<8x256xf32, #tpu.memory_space<vmem>>, vector<1x256xf32>
    %cst_17 = arith.constant dense<0.000000e+00> : vector<256xf32>
    %31 = vector.multi_reduction <add>, %28, %cst_17 [0] : vector<8x256xf32> to vector<256xf32>
    %32 = vector.shape_cast %31 : vector<256xf32> to vector<1x256xf32>
    %cst_18 = arith.constant 1.250000e-01 : f32
    %33 = vector.broadcast %cst_18 : f32 to vector<1x256xf32>
    %34 = arith.mulf %32, %33 : vector<1x256xf32>
    %35 = vector.broadcast %34 : vector<1x256xf32> to vector<8x256xf32>
    %36 = arith.subf %28, %35 : vector<8x256xf32>
    %37 = arith.mulf %36, %36 : vector<8x256xf32>
    %cst_19 = arith.constant dense<0.000000e+00> : vector<256xf32>
    %38 = vector.multi_reduction <add>, %37, %cst_19 [0] : vector<8x256xf32> to vector<256xf32>
    %39 = vector.shape_cast %38 : vector<256xf32> to vector<1x256xf32>
    %cst_20 = arith.constant 1.250000e-01 : f32
    %40 = vector.broadcast %cst_20 : f32 to vector<1x256xf32>
    %41 = arith.mulf %39, %40 : vector<1x256xf32>
    %cst_21 = arith.constant 9.99999974E-6 : f32
    %42 = vector.broadcast %cst_21 : f32 to vector<1x256xf32>
    %43 = arith.addf %41, %42 : vector<1x256xf32>
    %44 = math.rsqrt %43 : vector<1x256xf32>
    %45 = arith.mulf %29, %44 : vector<1x256xf32>
    %46 = vector.broadcast %45 : vector<1x256xf32> to vector<8x256xf32>
    %47 = arith.mulf %36, %46 : vector<8x256xf32>
    %48 = vector.broadcast %30 : vector<1x256xf32> to vector<8x256xf32>
    %49 = arith.addf %47, %48 : vector<8x256xf32>
    %cst_22 = arith.constant 0.000000e+00 : f32
    %50 = vector.broadcast %cst_22 : f32 to vector<8x256xf32>
    %51 = arith.maximumf %49, %50 : vector<8x256xf32>
    %52 = arith.truncf %51 : vector<8x256xf32> to vector<8x256xbf16>
    %c0_23 = arith.constant 0 : index
    %c0_24 = arith.constant 0 : index
    %53 = vector.load %arg3[%c0_23, %c0_24] : memref<256x128xbf16, #tpu.memory_space<vmem>>, vector<256x128xbf16>
    %cst_25 = arith.constant dense<0.000000e+00> : vector<8x128xf32>
    %54 = tpu.matmul %52, %53, %cst_25 {dimension_numbers = #tpu.dot_dimension_numbers<[1], [0], [0], [1], [0, 0, 1, 1], [], []>} : vector<8x256xbf16>, vector<256x128xbf16>, vector<8x128xf32> -> vector<8x128xf32>
    %c4 = arith.constant 4 : index
    %c0_26 = arith.constant 0 : index
    %55 = vector.load %arg5[%c4, %c0_26] : memref<8x256xf32, #tpu.memory_space<vmem>>, vector<1x128xf32>
    %c5 = arith.constant 5 : index
    %c0_27 = arith.constant 0 : index
    %56 = vector.load %arg5[%c5, %c0_27] : memref<8x256xf32, #tpu.memory_space<vmem>>, vector<1x128xf32>
    %cst_28 = arith.constant dense<0.000000e+00> : vector<128xf32>
    %57 = vector.multi_reduction <add>, %54, %cst_28 [0] : vector<8x128xf32> to vector<128xf32>
    %58 = vector.shape_cast %57 : vector<128xf32> to vector<1x128xf32>
    %cst_29 = arith.constant 1.250000e-01 : f32
    %59 = vector.broadcast %cst_29 : f32 to vector<1x128xf32>
    %60 = arith.mulf %58, %59 : vector<1x128xf32>
    %61 = vector.broadcast %60 : vector<1x128xf32> to vector<8x128xf32>
    %62 = arith.subf %54, %61 : vector<8x128xf32>
    %63 = arith.mulf %62, %62 : vector<8x128xf32>
    %cst_30 = arith.constant dense<0.000000e+00> : vector<128xf32>
    %64 = vector.multi_reduction <add>, %63, %cst_30 [0] : vector<8x128xf32> to vector<128xf32>
    %65 = vector.shape_cast %64 : vector<128xf32> to vector<1x128xf32>
    %cst_31 = arith.constant 1.250000e-01 : f32
    %66 = vector.broadcast %cst_31 : f32 to vector<1x128xf32>
    %67 = arith.mulf %65, %66 : vector<1x128xf32>
    %cst_32 = arith.constant 9.99999974E-6 : f32
    %68 = vector.broadcast %cst_32 : f32 to vector<1x128xf32>
    %69 = arith.addf %67, %68 : vector<1x128xf32>
    %70 = math.rsqrt %69 : vector<1x128xf32>
    %71 = arith.mulf %55, %70 : vector<1x128xf32>
    %72 = vector.broadcast %71 : vector<1x128xf32> to vector<8x128xf32>
    %73 = arith.mulf %62, %72 : vector<8x128xf32>
    %74 = vector.broadcast %56 : vector<1x128xf32> to vector<8x128xf32>
    %75 = arith.addf %73, %74 : vector<8x128xf32>
    %cst_33 = arith.constant 0.000000e+00 : f32
    %76 = vector.broadcast %cst_33 : f32 to vector<8x128xf32>
    %77 = arith.maximumf %75, %76 : vector<8x128xf32>
    %78 = arith.truncf %77 : vector<8x128xf32> to vector<8x128xbf16>
    %c0_34 = arith.constant 0 : index
    %c0_35 = arith.constant 0 : index
    %79 = vector.load %arg4[%c0_34, %c0_35] : memref<128x128xbf16, #tpu.memory_space<vmem>>, vector<128x128xbf16>
    %cst_36 = arith.constant dense<0.000000e+00> : vector<8x128xf32>
    %80 = tpu.matmul %78, %79, %cst_36 {dimension_numbers = #tpu.dot_dimension_numbers<[1], [0], [0], [1], [0, 0, 1, 1], [], []>} : vector<8x128xbf16>, vector<128x128xbf16>, vector<8x128xf32> -> vector<8x128xf32>
    %c6 = arith.constant 6 : index
    %c0_37 = arith.constant 0 : index
    %81 = vector.load %arg5[%c6, %c0_37] : memref<8x256xf32, #tpu.memory_space<vmem>>, vector<1x128xf32>
    %82 = vector.broadcast %81 : vector<1x128xf32> to vector<8x128xf32>
    %83 = arith.addf %80, %82 : vector<8x128xf32>
    %c0_38 = arith.constant 0 : index
    %c0_39 = arith.constant 0 : index
    %84 = vector.load %arg6[%c0_38, %c0_39] : memref<8x128xf32, #tpu.memory_space<vmem>>, vector<8x128xf32>
    tpu.vector_store %arg6[%c0_38, %c0_39], %83 {strides = array<i32>} : memref<8x128xf32, #tpu.memory_space<vmem>>, vector<8x128xf32>,
    return
  }
}

</mosaic_0001>

<llo_original>
// kernel: tpu_custom_call.1
$region0: #{tpu_custom_call.1}
  #allocation0 [shape = 'u32[]', space=smem, size = 0x4, offset = 0x4, fixed_abs, tag = 'smem constant byte address 0x4 - core index']
  #allocation1 [shape = 'u32[144,128]{1,0:T(1,128)}', space=vmem, size = 0x12000, scoped, tag = 'internal scratch']
  %s0 = inlined_call_operand.hbm [shape: bf16[8,512], index: 0, kind: input, shape index: {}]
  %s1 = inlined_call_operand.hbm [shape: bf16[512,256], index: 1, kind: input, shape index: {}]
  %s2 = inlined_call_operand.hbm [shape: bf16[256,256], index: 2, kind: input, shape index: {}]
  %s3 = inlined_call_operand.hbm [shape: bf16[256,128], index: 3, kind: input, shape index: {}]
  %s4 = inlined_call_operand.hbm [shape: bf16[128,128], index: 4, kind: input, shape index: {}]
  %s5 = inlined_call_operand.vmem [shape: f32[8,256], index: 5, kind: input, shape index: {}]
  %s6 = inlined_call_operand.hbm [shape: f32[8,128], index: 6, kind: output, shape index: {}]
  %s7 = sld [smem:[#allocation0]]
  $region54: #{tpu_custom_call.1} parent=0
    _
  %s9 = ssub.s32 1, %s7
  %s10 = scalar_select 0, %s9, %s7
  $region1: #{tpu_custom_call.1} parent=0
    #allocation2 [shape = 'u8[8192]{0}', space=vmem, size = 0x2000, scoped, tag = 'input window, operand 0, single buffered']
    #allocation3 [shape = 's32[1]{0}', space=sflag, size = 0x4, scoped, tag = 'scoped memory for tpu_custom_call.1']
    #allocation4 [shape = 's32[1]{0}', space=sflag, size = 0x4, scoped, tag = 'scoped memory for tpu_custom_call.1']
    #allocation5 [shape = 'u8[262144]{0}', space=vmem, size = 0x40000, scoped, tag = 'input window, operand 1, single buffered']
    #allocation6 [shape = 's32[1]{0}', space=sflag, size = 0x4, scoped, tag = 'scoped memory for tpu_custom_call.1']
    #allocation7 [shape = 'u8[131072]{0}', space=vmem, size = 0x20000, scoped, tag = 'input window, operand 2, single buffered']
    #allocation8 [shape = 'u8[65536]{0}', space=vmem, size = 0x10000, scoped, tag = 'input window, operand 3, single buffered']
    #allocation9 [shape = 's32[1]{0}', space=sflag, size = 0x4, scoped, tag = 'scoped memory for tpu_custom_call.1']
    #allocation10 [shape = 'u8[32768]{0}', space=vmem, size = 0x8000, scoped, tag = 'input window, operand 4, single buffered']
    #allocation11 [shape = 'u8[4096]{0}', space=vmem, size = 0x1000, scoped, tag = 'output window, operand 0, single buffered']
    %11 = vsyncpa [#allocation3], 0
    %12 = vsyncpa [#allocation6], 0
    %13 = vsyncpa [#allocation9], 0
    %14 = vsyncpa [#allocation4], 0
    // Predicated region
    $region2: #{tpu_custom_call.1} parent=1 // pred_check
      _
    $region3: #{tpu_custom_call.1} parent=1 // pred_check_branch
      %16 = sbr.rel (0) target = $region5
    $region4: #{tpu_custom_call.1} parent=1 // pred_region
      %s18 = ssub.s32 256, 256
      %19 = vsyncadd [#allocation3], %s18
      %s21 = sshll.u32 [#allocation2], 4
      %s22 = int_to_ptr.vmem [resolvable:$true] %s21
      %24 = dma.hbm_to_vmem [thread:$0]  %s0, 256, %s22, [#allocation3]
    $region5: #{tpu_custom_call.1} parent=1 // pred_fallthru
      _
    // Predicated region
    $region6: #{tpu_custom_call.1} parent=1 // pred_check
      _
    $region7: #{tpu_custom_call.1} parent=1 // pred_check_branch
      %26 = sbr.rel (0) target = $region9
    $region8: #{tpu_custom_call.1} parent=1 // pred_region
      %s28 = ssub.s32 8192, 8192
      %29 = vsyncadd [#allocation6], %s28
      %s30 = sshll.u32 [#allocation5], 4
      %s31 = int_to_ptr.vmem [resolvable:$true] %s30
      %36 = dma.hbm_to_vmem [thread:$0]  %s1, 8192, %s31, [#allocation6], 128, 128, 8
    $region9: #{tpu_custom_call.1} parent=1 // pred_fallthru
      _
    // Predicated region
    $region10: #{tpu_custom_call.1} parent=1 // pred_check
      _
    $region11: #{tpu_custom_call.1} parent=1 // pred_check_branch
      %38 = sbr.rel (0) target = $region13
    $region12: #{tpu_custom_call.1} parent=1 // pred_region
      %s40 = ssub.s32 4096, 4096
      %41 = vsyncadd [#allocation6], %s40
      %s42 = sshll.u32 [#allocation7], 4
      %s43 = int_to_ptr.vmem [resolvable:$true] %s42
      %48 = dma.hbm_to_vmem [thread:$0]  %s2, 4096, %s43, [#allocation6], 128, 128, 8
    $region13: #{tpu_custom_call.1} parent=1 // pred_fallthru
      _
    // Predicated region
    $region14: #{tpu_custom_call.1} parent=1 // pred_check
      _
    $region15: #{tpu_custom_call.1} parent=1 // pred_check_branch
      %50 = sbr.rel (0) target = $region17
    $region16: #{tpu_custom_call.1} parent=1 // pred_region
      %s52 = ssub.s32 2048, 2048
      %53 = vsyncadd [#allocation9], %s52
      %s54 = sshll.u32 [#allocation8], 4
      %s55 = int_to_ptr.vmem [resolvable:$true] %s54
      %60 = dma.hbm_to_vmem [thread:$0]  %s3, 2048, %s55, [#allocation9], 64, 64, 4
    $region17: #{tpu_custom_call.1} parent=1 // pred_fallthru
      _
    // Predicated region
    $region18: #{tpu_custom_call.1} parent=1 // pred_check
      _
    $region19: #{tpu_custom_call.1} parent=1 // pred_check_branch
      %62 = sbr.rel (0) target = $region21
    $region20: #{tpu_custom_call.1} parent=1 // pred_region
      %s64 = ssub.s32 1024, 1024
      %65 = vsyncadd [#allocation9], %s64
      %s66 = sshll.u32 [#allocation10], 4
      %s67 = int_to_ptr.vmem [resolvable:$true] %s66
      %72 = dma.hbm_to_vmem [thread:$0]  %s4, 1024, %s67, [#allocation9], 64, 64, 4
    $region21: #{tpu_custom_call.1} parent=1 // pred_fallthru
      _
    // Predicated region
    $region22: #{tpu_custom_call.1} parent=1 // pred_check
      _
    $region23: #{tpu_custom_call.1} parent=1 // pred_check_branch
      %74 = sbr.rel (0) target = $region25
    $region24: #{tpu_custom_call.1} parent=1 // pred_region
      _
    $region25: #{tpu_custom_call.1} parent=1 // pred_fallthru
      _
    // Predicated region
    $region26: #{tpu_custom_call.1} parent=1 // pred_check
      _
    $region27: #{tpu_custom_call.1} parent=1 // pred_check_branch
      %76 = sbr.rel (0) target = $region29
    $region28: #{tpu_custom_call.1} parent=1 // pred_region
      %77 = dma.done [#allocation3], 256
    $region29: #{tpu_custom_call.1} parent=1 // pred_fallthru
      _
    // Predicated region
    $region30: #{tpu_custom_call.1} parent=1 // pred_check
      _
    $region31: #{tpu_custom_call.1} parent=1 // pred_check_branch
      %79 = sbr.rel (0) target = $region33
    $region32: #{tpu_custom_call.1} parent=1 // pred_region
      %80 = dma.done [#allocation6], 8192
    $region33: #{tpu_custom_call.1} parent=1 // pred_fallthru
      _
    // Predicated region
    $region34: #{tpu_custom_call.1} parent=1 // pred_check
      _
    $region35: #{tpu_custom_call.1} parent=1 // pred_check_branch
      %82 = sbr.rel (0) target = $region37
    $region36: #{tpu_custom_call.1} parent=1 // pred_region
      %83 = dma.done [#allocation6], 4096
    $region37: #{tpu_custom_call.1} parent=1 // pred_fallthru
      _
    // Predicated region
    $region38: #{tpu_custom_call.1} parent=1 // pred_check
      _
    $region39: #{tpu_custom_call.1} parent=1 // pred_check_branch
      %85 = sbr.rel (0) target = $region41
    $region40: #{tpu_custom_call.1} parent=1 // pred_region
      %86 = dma.done [#allocation9], 2048
    $region41: #{tpu_custom_call.1} parent=1 // pred_fallthru
      _
    // Predicated region
    $region42: #{tpu_custom_call.1} parent=1 // pred_check
      _
    $region43: #{tpu_custom_call.1} parent=1 // pred_check_branch
      %88 = sbr.rel (0) target = $region45
    $region44: #{tpu_custom_call.1} parent=1 // pred_region
      %89 = dma.done [#allocation9], 1024
    $region45: #{tpu_custom_call.1} parent=1 // pred_fallthru
      _
    %v91 = vld [vmem:[#allocation2] sm:$0xff]
    %v92 = vld [vmem:[#allocation2 + $0x8] sm:$0xff]
    %v93 = vld [vmem:[#allocation5] sm:$0xff]
    %v94 = vld [vmem:[#allocation5 + $0x8] sm:$0xff]
    %v95 = vld [vmem:[#allocation5 + $0x10] sm:$0xff]
    %v96 = vld [vmem:[#allocation5 + $0x18] sm:$0xff]
    %v97 = vld [vmem:[#allocation5 + $0x20] sm:$0xff]
    %v98 = vld [vmem:[#allocation5 + $0x28] sm:$0xff]
    %v99 = vld [vmem:[#allocation5 + $0x30] sm:$0xff]
    %v100 = vld [vmem:[#allocation5 + $0x38] sm:$0xff]
    %v101 = vld [vmem:[#allocation5 + $0x40] sm:$0xff]
    %v102 = vld [vmem:[#allocation5 + $0x48] sm:$0xff]
    %v103 = vld [vmem:[#allocation5 + $0x50] sm:$0xff]
    %v104 = vld [vmem:[#allocation5 + $0x58] sm:$0xff]
    %v105 = vld [vmem:[#allocation5 + $0x60] sm:$0xff]
    %v106 = vld [vmem:[#allocation5 + $0x68] sm:$0xff]
    %v107 = vld [vmem:[#allocation5 + $0x70] sm:$0xff]
    %v108 = vld [vmem:[#allocation5 + $0x78] sm:$0xff]
    %v109 = vld [vmem:[#allocation5 + $0x80] sm:$0xff]
    %v110 = vld [vmem:[#allocation5 + $0x88] sm:$0xff]
    %v111 = vld [vmem:[#allocation5 + $0x90] sm:$0xff]
    %v112 = vld [vmem:[#allocation5 + $0x98] sm:$0xff]
    %v113 = vld [vmem:[#allocation5 + $0xa0] sm:$0xff]
    %v114 = vld [vmem:[#allocation5 + $0xa8] sm:$0xff]
    %v115 = vld [vmem:[#allocation5 + $0xb0] sm:$0xff]
    %v116 = vld [vmem:[#allocation5 + $0xb8] sm:$0xff]
    %v117 = vld [vmem:[#allocation5 + $0xc0] sm:$0xff]
    %v118 = vld [vmem:[#allocation5 + $0xc8] sm:$0xff]
    %v119 = vld [vmem:[#allocation5 + $0xd0] sm:$0xff]
    %v120 = vld [vmem:[#allocation5 + $0xd8] sm:$0xff]
    %v121 = vld [vmem:[#allocation5 + $0xe0] sm:$0xff]
    %v122 = vld [vmem:[#allocation5 + $0xe8] sm:$0xff]
    %v123 = vld [vmem:[#allocation5 + $0xf0] sm:$0xff]
    %v124 = vld [vmem:[#allocation5 + $0xf8] sm:$0xff]
    %v125 = vld [vmem:[#allocation5 + $0x100] sm:$0xff]
    %v126 = vld [vmem:[#allocation5 + $0x108] sm:$0xff]
    %v127 = vld [vmem:[#allocation5 + $0x110] sm:$0xff]
    %v128 = vld [vmem:[#allocation5 + $0x118] sm:$0xff]
    %v129 = vld [vmem:[#allocation5 + $0x120] sm:$0xff]
    %v130 = vld [vmem:[#allocation5 + $0x128] sm:$0xff]
    %v131 = vld [vmem:[#allocation5 + $0x130] sm:$0xff]
    %v132 = vld [vmem:[#allocation5 + $0x138] sm:$0xff]
    %v133 = vld [vmem:[#allocation5 + $0x140] sm:$0xff]
    %v134 = vld [vmem:[#allocation5 + $0x148] sm:$0xff]
    %v135 = vld [vmem:[#allocation5 + $0x150] sm:$0xff]
    %v136 = vld [vmem:[#allocation5 + $0x158] sm:$0xff]
    %v137 = vld [vmem:[#allocation5 + $0x160] sm:$0xff]
    %v138 = vld [vmem:[#allocation5 + $0x168] sm:$0xff]
    %v139 = vld [vmem:[#allocation5 + $0x170] sm:$0xff]
    %v140 = vld [vmem:[#allocation5 + $0x178] sm:$0xff]
    %v141 = vld [vmem:[#allocation5 + $0x180] sm:$0xff]
    %v142 = vld [vmem:[#allocation5 + $0x188] sm:$0xff]
    %v143 = vld [vmem:[#allocation5 + $0x190] sm:$0xff]
    %v144 = vld [vmem:[#allocation5 + $0x198] sm:$0xff]
    %v145 = vld [vmem:[#allocation5 + $0x1a0] sm:$0xff]
    %v146 = vld [vmem:[#allocation5 + $0x1a8] sm:$0xff]
    %v147 = vld [vmem:[#allocation5 + $0x1b0] sm:$0xff]
    %v148 = vld [vmem:[#allocation5 + $0x1b8] sm:$0xff]
    %v149 = vld [vmem:[#allocation5 + $0x1c0] sm:$0xff]
    %v150 = vld [vmem:[#allocation5 + $0x1c8] sm:$0xff]
    %v151 = vld [vmem:[#allocation5 + $0x1d0] sm:$0xff]
    %v152 = vld [vmem:[#allocation5 + $0x1d8] sm:$0xff]
    %v153 = vld [vmem:[#allocation5 + $0x1e0] sm:$0xff]
    %v154 = vld [vmem:[#allocation5 + $0x1e8] sm:$0xff]
    %v155 = vld [vmem:[#allocation5 + $0x1f0] sm:$0xff]
    %v156 = vld [vmem:[#allocation5 + $0x1f8] sm:$0xff]
    %v159 = vunpack.c.l.b16 %v91
    %v160 = vunpack.c.h.b16 %v91
    %v161 = vunpack.c.l.b16 %v92
    %v162 = vunpack.c.h.b16 %v92
    %v163 = vpack.c.b16 %v159, %v159
    %v164 = vpack.c.b16 %v160, %v160
    %v165 = vpack.c.b16 %v161, %v161
    %v166 = vpack.c.b16 %v162, %v162
    %v235 = vunpack.c.l.b16 %v93
    %v236 = vunpack.c.h.b16 %v93
    %v237 = vunpack.c.l.b16 %v94
    %v238 = vunpack.c.h.b16 %v94
    %v239 = vunpack.c.l.b16 %v95
    %v240 = vunpack.c.h.b16 %v95
    %v241 = vunpack.c.l.b16 %v96
    %v242 = vunpack.c.h.b16 %v96
    %v243 = vunpack.c.l.b16 %v97
    %v244 = vunpack.c.h.b16 %v97
    %v245 = vunpack.c.l.b16 %v98
    %v246 = vunpack.c.h.b16 %v98
    %v247 = vunpack.c.l.b16 %v99
    %v248 = vunpack.c.h.b16 %v99
    %v249 = vunpack.c.l.b16 %v100
    %v250 = vunpack.c.h.b16 %v100
    %v251 = vunpack.c.l.b16 %v101
    %v252 = vunpack.c.h.b16 %v101
    %v253 = vunpack.c.l.b16 %v102
    %v254 = vunpack.c.h.b16 %v102
    %v255 = vunpack.c.l.b16 %v103
    %v256 = vunpack.c.h.b16 %v103
    %v257 = vunpack.c.l.b16 %v104
    %v258 = vunpack.c.h.b16 %v104
    %v259 = vunpack.c.l.b16 %v105
    %v260 = vunpack.c.h.b16 %v105
    %v261 = vunpack.c.l.b16 %v106
    %v262 = vunpack.c.h.b16 %v106
    %v263 = vunpack.c.l.b16 %v107
    %v264 = vunpack.c.h.b16 %v107
    %v265 = vunpack.c.l.b16 %v108
    %v266 = vunpack.c.h.b16 %v108
    %v267 = vunpack.c.l.b16 %v109
    %v268 = vunpack.c.h.b16 %v109
    %v269 = vunpack.c.l.b16 %v110
    %v270 = vunpack.c.h.b16 %v110
    %v271 = vunpack.c.l.b16 %v111
    %v272 = vunpack.c.h.b16 %v111
    %v273 = vunpack.c.l.b16 %v112
    %v274 = vunpack.c.h.b16 %v112
    %v275 = vunpack.c.l.b16 %v113
    %v276 = vunpack.c.h.b16 %v113
    %v277 = vunpack.c.l.b16 %v114
    %v278 = vunpack.c.h.b16 %v114
    %v279 = vunpack.c.l.b16 %v115
    %v280 = vunpack.c.h.b16 %v115
    %v281 = vunpack.c.l.b16 %v116
    %v282 = vunpack.c.h.b16 %v116
    %v283 = vunpack.c.l.b16 %v117
    %v284 = vunpack.c.h.b16 %v117
    %v285 = vunpack.c.l.b16 %v118
    %v286 = vunpack.c.h.b16 %v118
    %v287 = vunpack.c.l.b16 %v119
    %v288 = vunpack.c.h.b16 %v119
    %v289 = vunpack.c.l.b16 %v120
    %v290 = vunpack.c.h.b16 %v120
    %v291 = vunpack.c.l.b16 %v121
    %v292 = vunpack.c.h.b16 %v121
    %v293 = vunpack.c.l.b16 %v122
    %v294 = vunpack.c.h.b16 %v122
    %v295 = vunpack.c.l.b16 %v123
    %v296 = vunpack.c.h.b16 %v123
    %v297 = vunpack.c.l.b16 %v124
    %v298 = vunpack.c.h.b16 %v124
    %v299 = vunpack.c.l.b16 %v125
    %v300 = vunpack.c.h.b16 %v125
    %v301 = vunpack.c.l.b16 %v126
    %v302 = vunpack.c.h.b16 %v126
    %v303 = vunpack.c.l.b16 %v127
    %v304 = vunpack.c.h.b16 %v127
    %v305 = vunpack.c.l.b16 %v128
    %v306 = vunpack.c.h.b16 %v128
    %v307 = vunpack.c.l.b16 %v129
    %v308 = vunpack.c.h.b16 %v129
    %v309 = vunpack.c.l.b16 %v130
    %v310 = vunpack.c.h.b16 %v130
    %v311 = vunpack.c.l.b16 %v131
    %v312 = vunpack.c.h.b16 %v131
    %v313 = vunpack.c.l.b16 %v132
    %v314 = vunpack.c.h.b16 %v132
    %v315 = vunpack.c.l.b16 %v133
    %v316 = vunpack.c.h.b16 %v133
    %v317 = vunpack.c.l.b16 %v134
    %v318 = vunpack.c.h.b16 %v134
    %v319 = vunpack.c.l.b16 %v135
    %v320 = vunpack.c.h.b16 %v135
    %v321 = vunpack.c.l.b16 %v136
    %v322 = vunpack.c.h.b16 %v136
    %v323 = vunpack.c.l.b16 %v137
    %v324 = vunpack.c.h.b16 %v137
    %v325 = vunpack.c.l.b16 %v138
    %v326 = vunpack.c.h.b16 %v138
    %v327 = vunpack.c.l.b16 %v139
    %v328 = vunpack.c.h.b16 %v139
    %v329 = vunpack.c.l.b16 %v140
    %v330 = vunpack.c.h.b16 %v140
    %v331 = vunpack.c.l.b16 %v141
    %v332 = vunpack.c.h.b16 %v141
    %v333 = vunpack.c.l.b16 %v142
    %v334 = vunpack.c.h.b16 %v142
    %v335 = vunpack.c.l.b16 %v143
    %v336 = vunpack.c.h.b16 %v143
    %v337 = vunpack.c.l.b16 %v144
    %v338 = vunpack.c.h.b16 %v144
    %v339 = vunpack.c.l.b16 %v145
    %v340 = vunpack.c.h.b16 %v145
    %v341 = vunpack.c.l.b16 %v146
    %v342 = vunpack.c.h.b16 %v146
    %v343 = vunpack.c.l.b16 %v147
    %v344 = vunpack.c.h.b16 %v147
    %v345 = vunpack.c.l.b16 %v148
    %v346 = vunpack.c.h.b16 %v148
    %v347 = vunpack.c.l.b16 %v149
    %v348 = vunpack.c.h.b16 %v149
    %v349 = vunpack.c.l.b16 %v150
    %v350 = vunpack.c.h.b16 %v150
    %v351 = vunpack.c.l.b16 %v151
    %v352 = vunpack.c.h.b16 %v151
    %v353 = vunpack.c.l.b16 %v152
    %v354 = vunpack.c.h.b16 %v152
    %v355 = vunpack.c.l.b16 %v153
    %v356 = vunpack.c.h.b16 %v153
    %v357 = vunpack.c.l.b16 %v154
    %v358 = vunpack.c.h.b16 %v154
    %v359 = vunpack.c.l.b16 %v155
    %v360 = vunpack.c.h.b16 %v155
    %v361 = vunpack.c.l.b16 %v156
    %v362 = vunpack.c.h.b16 %v156
    %v363 = vpack.c.b16 %v237, %v235
    %v364 = vpack.c.b16 %v238, %v236
    %v365 = vpack.c.b16 %v241, %v239
    %v366 = vpack.c.b16 %v242, %v240
    %v367 = vpack.c.b16 %v245, %v243
    %v368 = vpack.c.b16 %v246, %v244
    %v369 = vpack.c.b16 %v249, %v247
    %v370 = vpack.c.b16 %v250, %v248
    %v371 = vpack.c.b16 %v253, %v251
    %v372 = vpack.c.b16 %v254, %v252
    %v373 = vpack.c.b16 %v257, %v255
    %v374 = vpack.c.b16 %v258, %v256
    %v375 = vpack.c.b16 %v261, %v259
    %v376 = vpack.c.b16 %v262, %v260
    %v377 = vpack.c.b16 %v265, %v263
    %v378 = vpack.c.b16 %v266, %v264
    %v379 = vpack.c.b16 %v269, %v267
    %v380 = vpack.c.b16 %v270, %v268
    %v381 = vpack.c.b16 %v273, %v271
    %v382 = vpack.c.b16 %v274, %v272
    %v383 = vpack.c.b16 %v277, %v275
    %v384 = vpack.c.b16 %v278, %v276
    %v385 = vpack.c.b16 %v281, %v279
    %v386 = vpack.c.b16 %v282, %v280
    %v387 = vpack.c.b16 %v285, %v283
    %v388 = vpack.c.b16 %v286, %v284
    %v389 = vpack.c.b16 %v289, %v287
    %v390 = vpack.c.b16 %v290, %v288
    %v391 = vpack.c.b16 %v293, %v291
    %v392 = vpack.c.b16 %v294, %v292
    %v393 = vpack.c.b16 %v297, %v295
    %v394 = vpack.c.b16 %v298, %v296
    %v395 = vpack.c.b16 %v301, %v299
    %v396 = vpack.c.b16 %v302, %v300
    %v397 = vpack.c.b16 %v305, %v303
    %v398 = vpack.c.b16 %v306, %v304
    %v399 = vpack.c.b16 %v309, %v307
    %v400 = vpack.c.b16 %v310, %v308
    %v401 = vpack.c.b16 %v313, %v311
    %v402 = vpack.c.b16 %v314, %v312
    %v403 = vpack.c.b16 %v317, %v315
    %v404 = vpack.c.b16 %v318, %v316
    %v405 = vpack.c.b16 %v321, %v319
    %v406 = vpack.c.b16 %v322, %v320
    %v407 = vpack.c.b16 %v325, %v323
    %v408 = vpack.c.b16 %v326, %v324
    %v409 = vpack.c.b16 %v329, %v327
    %v410 = vpack.c.b16 %v330, %v328
    %v411 = vpack.c.b16 %v333, %v331
    %v412 = vpack.c.b16 %v334, %v332
    %v413 = vpack.c.b16 %v337, %v335
    %v414 = vpack.c.b16 %v338, %v336
    %v415 = vpack.c.b16 %v341, %v339
    %v416 = vpack.c.b16 %v342, %v340
    %v417 = vpack.c.b16 %v345, %v343
    %v418 = vpack.c.b16 %v346, %v344
    %v419 = vpack.c.b16 %v349, %v347
    %v420 = vpack.c.b16 %v350, %v348
    %v421 = vpack.c.b16 %v353, %v351
    %v422 = vpack.c.b16 %v354, %v352
    %v423 = vpack.c.b16 %v357, %v355
    %v424 = vpack.c.b16 %v358, %v356
    %v425 = vpack.c.b16 %v361, %v359
    %v426 = vpack.c.b16 %v362, %v360
    %491 = vmatprep.subr.bf16.mxu0 %v364
    %492 = vmatpush1.bf16.msra.mxu0 %v363
    %493 = vmatprep.subr.bf16.mxu0 %v366
    %494 = vmatpush1.bf16.msra.mxu0 %v365
    %495 = vmatprep.subr.bf16.mxu0 %v368
    %496 = vmatpush1.bf16.msra.mxu0 %v367
    %497 = vmatprep.subr.bf16.mxu0 %v370
    %498 = vmatpush1.bf16.msra.mxu0 %v369
    %499 = vmatprep.subr.bf16.mxu0 %v372
    %500 = vmatpush1.bf16.msra.mxu0 %v371
    %501 = vmatprep.subr.bf16.mxu0 %v374
    %502 = vmatpush1.bf16.msra.mxu0 %v373
    %503 = vmatprep.subr.bf16.mxu0 %v376
    %504 = vmatpush1.bf16.msra.mxu0 %v375
    %505 = vmatprep.subr.bf16.mxu0 %v378
    %506 = vmatpush1.bf16.msra.mxu0 %v377
    %507 = vmatprep.subr.bf16.mxu0 %v380
    %508 = vmatpush1.bf16.msra.mxu0 %v379
    %509 = vmatprep.subr.bf16.mxu0 %v382
    %510 = vmatpush1.bf16.msra.mxu0 %v381
    %511 = vmatprep.subr.bf16.mxu0 %v384
    %512 = vmatpush1.bf16.msra.mxu0 %v383
    %513 = vmatprep.subr.bf16.mxu0 %v386
    %514 = vmatpush1.bf16.msra.mxu0 %v385
    %515 = vmatprep.subr.bf16.mxu0 %v388
    %516 = vmatpush1.bf16.msra.mxu0 %v387
    %517 = vmatprep.subr.bf16.mxu0 %v390
    %518 = vmatpush1.bf16.msra.mxu0 %v389
    %519 = vmatprep.subr.bf16.mxu0 %v392
    %520 = vmatpush1.bf16.msra.mxu0 %v391
    %521 = vmatprep.subr.bf16.mxu0 %v394
    %522 = vmatpush1.bf16.msra.mxu0 %v393
    %523 = vmatprep.mubr.bf16.mxu0 %v164
    %524 = vmatmul.mubr.bf16.gmra.mrb[0].mxu0 %v163
    %v525 = vpop.f32.mrb[0].mxu0
    %v526 = vadd.f32 0.0, %v525
    %v527 = vpop.f32.mrb[0].mxu0
    %v528 = vadd.f32 0.0, %v527
    %v529 = vpop.f32.mrb[0].mxu0
    %v530 = vpop.f32.mrb[0].mxu0
    %531 = vdwg.mxu0
    %532 = vmatprep.subr.bf16.mxu0 %v396
    %533 = vmatpush1.bf16.msra.mxu0 %v395
    %534 = vmatprep.subr.bf16.mxu0 %v398
    %535 = vmatpush1.bf16.msra.mxu0 %v397
    %536 = vmatprep.subr.bf16.mxu0 %v400
    %537 = vmatpush1.bf16.msra.mxu0 %v399
    %538 = vmatprep.subr.bf16.mxu0 %v402
    %539 = vmatpush1.bf16.msra.mxu0 %v401
    %540 = vmatprep.subr.bf16.mxu0 %v404
    %541 = vmatpush1.bf16.msra.mxu0 %v403
    %542 = vmatprep.subr.bf16.mxu0 %v406
    %543 = vmatpush1.bf16.msra.mxu0 %v405
    %544 = vmatprep.subr.bf16.mxu0 %v408
    %545 = vmatpush1.bf16.msra.mxu0 %v407
    %546 = vmatprep.subr.bf16.mxu0 %v410
    %547 = vmatpush1.bf16.msra.mxu0 %v409
    %548 = vmatprep.subr.bf16.mxu0 %v412
    %549 = vmatpush1.bf16.msra.mxu0 %v411
    %550 = vmatprep.subr.bf16.mxu0 %v414
    %551 = vmatpush1.bf16.msra.mxu0 %v413
    %552 = vmatprep.subr.bf16.mxu0 %v416
    %553 = vmatpush1.bf16.msra.mxu0 %v415
    %554 = vmatprep.subr.bf16.mxu0 %v418
    %555 = vmatpush1.bf16.msra.mxu0 %v417
    %556 = vmatprep.subr.bf16.mxu0 %v420
    %557 = vmatpush1.bf16.msra.mxu0 %v419
    %558 = vmatprep.subr.bf16.mxu0 %v422
    %559 = vmatpush1.bf16.msra.mxu0 %v421
    %560 = vmatprep.subr.bf16.mxu0 %v424
    %561 = vmatpush1.bf16.msra.mxu0 %v423
    %562 = vmatprep.subr.bf16.mxu0 %v426
    %563 = vmatpush1.bf16.msra.mxu0 %v425
    %564 = vmatprep.mubr.bf16.mxu0 %v166
    %565 = vmatmul.mubr.bf16.gmra.mrb[0].mxu0 %v165
    %v566 = vpop.f32.mrb[0].mxu0
    %v567 = vadd.f32 %v526, %v566
    %v568 = vpop.f32.mrb[0].mxu0
    %v569 = vadd.f32 %v528, %v568
    %v570 = vpop.f32.mrb[0].mxu0
    %v571 = vpop.f32.mrb[0].mxu0
    %572 = vdwg.mxu0
    %v573 = vld [vmem:[%s5] ss:$8 sm:$0x3]
    %s574 = scalar_lea.vmem %s5, 1
    %v575 = vld [vmem:[%s574] ss:$8 sm:$0x3]
    %v576 = vrot.slane %v567, 4
    %v577 = vadd.f32 %v567, %v576
    %v578 = vrot.slane %v577, 2
    %v579 = vadd.f32 %v577, %v578
    %v580 = vrot.slane %v579, 1
    %v581 = vadd.f32 %v579, %v580
    %v582 = vrot.slane %v569, 4
    %v583 = vadd.f32 %v569, %v582
    %v584 = vrot.slane %v583, 2
    %v585 = vadd.f32 %v583, %v584
    %v586 = vrot.slane %v585, 1
    %v587 = vadd.f32 %v585, %v586
    %v588 = vmul.f32 %v581, 0.125
    %v589 = vmul.f32 %v587, 0.125
    %v590 = vsub.f32 %v567, %v588
    %v591 = vsub.f32 %v569, %v589
    %v592 = vmul.f32 %v590, %v590
    %v593 = vmul.f32 %v591, %v591
    %v594 = vrot.slane %v592, 4
    %v595 = vadd.f32 %v592, %v594
    %v596 = vrot.slane %v595, 2
    %v597 = vadd.f32 %v595, %v596
    %v598 = vrot.slane %v597, 1
    %v599 = vadd.f32 %v597, %v598
    %v600 = vrot.slane %v593, 4
    %v601 = vadd.f32 %v593, %v600
    %v602 = vrot.slane %v601, 2
    %v603 = vadd.f32 %v601, %v602
    %v604 = vrot.slane %v603, 1
    %v605 = vadd.f32 %v603, %v604
    %v606 = vmul.f32 %v599, 0.125
    %v607 = vmul.f32 %v605, 0.125
    %v608 = vadd.f32 %v606, 1e-05
    %v609 = vadd.f32 %v607, 1e-05
    %v610 = vrsqrt.pop %v608
    %v611 = vrsqrt.pop %v609
    %v614 = vcombine.low %v610, %v611
    %v616 = vunpack.c.l.s4 1966171168
    %v617 = vunpack.c.0.s8 %v616
    %v618 = vlaneseq
    %v619 = vshrl.u32 %v618, 7
    %v620 = vsub.s32 %v617, %v619
    %v621 = vrot.slane %v614, %v620
    %v623 = vunpack.c.l.s4 1966171168
    %v624 = vunpack.c.0.s8 %v623
    %v625 = vlaneseq
    %v626 = vshrl.u32 %v625, 7
    %v627 = vsub.s32 %v624, %v626
    %v628 = vrot.slane %v621, %v627
    %v630 = vmul.f32 %v573, %v628
    %v632 = vlaneseq
    %v633 = vshrl.u32 %v632, 7
    %v634 = vsub.s32 0, %v633
    %v635 = vrot.slane %v630, %v634
    %v636 = vlaneseq
    %v637 = vshrl.u32 %v636, 7
    %v638 = vsub.s32 1, %v637
    %v639 = vrot.slane %v630, %v638
    %v642 = vmul.f32 %v590, %v635
    %v643 = vmul.f32 %v591, %v639
    %v645 = vlaneseq
    %v646 = vshrl.u32 %v645, 7
    %v647 = vsub.s32 0, %v646
    %v648 = vrot.slane %v575, %v647
    %v649 = vlaneseq
    %v650 = vshrl.u32 %v649, 7
    %v651 = vsub.s32 1, %v650
    %v652 = vrot.slane %v575, %v651
    %v655 = vadd.f32 %v642, %v648
    %v656 = vadd.f32 %v643, %v652
    %v657 = vmax.f32 %v655, 0.0
    %v658 = vmax.f32 %v656, 0.0
    %v659 = vpack.c.bf16 %v657, %v657
    %v660 = vpack.c.bf16 %v658, %v658
    %v661 = vld [vmem:[#allocation7] sm:$0xff]
    %v662 = vld [vmem:[#allocation7 + $0x8] sm:$0xff]
    %v663 = vld [vmem:[#allocation7 + $0x10] sm:$0xff]
    %v664 = vld [vmem:[#allocation7 + $0x18] sm:$0xff]
    %v665 = vld [vmem:[#allocation7 + $0x20] sm:$0xff]
    %v666 = vld [vmem:[#allocation7 + $0x28] sm:$0xff]
    %v667 = vld [vmem:[#allocation7 + $0x30] sm:$0xff]
    %v668 = vld [vmem:[#allocation7 + $0x38] sm:$0xff]
    %v669 = vld [vmem:[#allocation7 + $0x40] sm:$0xff]
    %v670 = vld [vmem:[#allocation7 + $0x48] sm:$0xff]
    %v671 = vld [vmem:[#allocation7 + $0x50] sm:$0xff]
    %v672 = vld [vmem:[#allocation7 + $0x58] sm:$0xff]
    %v673 = vld [vmem:[#allocation7 + $0x60] sm:$0xff]
    %v674 = vld [vmem:[#allocation7 + $0x68] sm:$0xff]
    %v675 = vld [vmem:[#allocation7 + $0x70] sm:$0xff]
    %v676 = vld [vmem:[#allocation7 + $0x78] sm:$0xff]
    %v677 = vld [vmem:[#allocation7 + $0x80] sm:$0xff]
    %v678 = vld [vmem:[#allocation7 + $0x88] sm:$0xff]
    %v679 = vld [vmem:[#allocation7 + $0x90] sm:$0xff]
    %v680 = vld [vmem:[#allocation7 + $0x98] sm:$0xff]
    %v681 = vld [vmem:[#allocation7 + $0xa0] sm:$0xff]
    %v682 = vld [vmem:[#allocation7 + $0xa8] sm:$0xff]
    %v683 = vld [vmem:[#allocation7 + $0xb0] sm:$0xff]
    %v684 = vld [vmem:[#allocation7 + $0xb8] sm:$0xff]
    %v685 = vld [vmem:[#allocation7 + $0xc0] sm:$0xff]
    %v686 = vld [vmem:[#allocation7 + $0xc8] sm:$0xff]
    %v687 = vld [vmem:[#allocation7 + $0xd0] sm:$0xff]
    %v688 = vld [vmem:[#allocation7 + $0xd8] sm:$0xff]
    %v689 = vld [vmem:[#allocation7 + $0xe0] sm:$0xff]
    %v690 = vld [vmem:[#allocation7 + $0xe8] sm:$0xff]
    %v691 = vld [vmem:[#allocation7 + $0xf0] sm:$0xff]
    %v692 = vld [vmem:[#allocation7 + $0xf8] sm:$0xff]
    %v725 = vunpack.c.l.b16 %v661
    %v726 = vunpack.c.h.b16 %v661
    %v727 = vunpack.c.l.b16 %v662
    %v728 = vunpack.c.h.b16 %v662
    %v729 = vunpack.c.l.b16 %v663
    %v730 = vunpack.c.h.b16 %v663
    %v731 = vunpack.c.l.b16 %v664
    %v732 = vunpack.c.h.b16 %v664
    %v733 = vunpack.c.l.b16 %v665
    %v734 = vunpack.c.h.b16 %v665
    %v735 = vunpack.c.l.b16 %v666
    %v736 = vunpack.c.h.b16 %v666
    %v737 = vunpack.c.l.b16 %v667
    %v738 = vunpack.c.h.b16 %v667
    %v739 = vunpack.c.l.b16 %v668
    %v740 = vunpack.c.h.b16 %v668
    %v741 = vunpack.c.l.b16 %v669
    %v742 = vunpack.c.h.b16 %v669
    %v743 = vunpack.c.l.b16 %v670
    %v744 = vunpack.c.h.b16 %v670
    %v745 = vunpack.c.l.b16 %v671
    %v746 = vunpack.c.h.b16 %v671
    %v747 = vunpack.c.l.b16 %v672
    %v748 = vunpack.c.h.b16 %v672
    %v749 = vunpack.c.l.b16 %v673
    %v750 = vunpack.c.h.b16 %v673
    %v751 = vunpack.c.l.b16 %v674
    %v752 = vunpack.c.h.b16 %v674
    %v753 = vunpack.c.l.b16 %v675
    %v754 = vunpack.c.h.b16 %v675
    %v755 = vunpack.c.l.b16 %v676
    %v756 = vunpack.c.h.b16 %v676
    %v757 = vunpack.c.l.b16 %v677
    %v758 = vunpack.c.h.b16 %v677
    %v759 = vunpack.c.l.b16 %v678
    %v760 = vunpack.c.h.b16 %v678
    %v761 = vunpack.c.l.b16 %v679
    %v762 = vunpack.c.h.b16 %v679
    %v763 = vunpack.c.l.b16 %v680
    %v764 = vunpack.c.h.b16 %v680
    %v765 = vunpack.c.l.b16 %v681
    %v766 = vunpack.c.h.b16 %v681
    %v767 = vunpack.c.l.b16 %v682
    %v768 = vunpack.c.h.b16 %v682
    %v769 = vunpack.c.l.b16 %v683
    %v770 = vunpack.c.h.b16 %v683
    %v771 = vunpack.c.l.b16 %v684
    %v772 = vunpack.c.h.b16 %v684
    %v773 = vunpack.c.l.b16 %v685
    %v774 = vunpack.c.h.b16 %v685
    %v775 = vunpack.c.l.b16 %v686
    %v776 = vunpack.c.h.b16 %v686
    %v777 = vunpack.c.l.b16 %v687
    %v778 = vunpack.c.h.b16 %v687
    %v779 = vunpack.c.l.b16 %v688
    %v780 = vunpack.c.h.b16 %v688
    %v781 = vunpack.c.l.b16 %v689
    %v782 = vunpack.c.h.b16 %v689
    %v783 = vunpack.c.l.b16 %v690
    %v784 = vunpack.c.h.b16 %v690
    %v785 = vunpack.c.l.b16 %v691
    %v786 = vunpack.c.h.b16 %v691
    %v787 = vunpack.c.l.b16 %v692
    %v788 = vunpack.c.h.b16 %v692
    %v789 = vpack.c.b16 %v727, %v725
    %v790 = vpack.c.b16 %v728, %v726
    %v791 = vpack.c.b16 %v731, %v729
    %v792 = vpack.c.b16 %v732, %v730
    %v793 = vpack.c.b16 %v735, %v733
    %v794 = vpack.c.b16 %v736, %v734
    %v795 = vpack.c.b16 %v739, %v737
    %v796 = vpack.c.b16 %v740, %v738
    %v797 = vpack.c.b16 %v743, %v741
    %v798 = vpack.c.b16 %v744, %v742
    %v799 = vpack.c.b16 %v747, %v745
    %v800 = vpack.c.b16 %v748, %v746
    %v801 = vpack.c.b16 %v751, %v749
    %v802 = vpack.c.b16 %v752, %v750
    %v803 = vpack.c.b16 %v755, %v753
    %v804 = vpack.c.b16 %v756, %v754
    %v805 = vpack.c.b16 %v759, %v757
    %v806 = vpack.c.b16 %v760, %v758
    %v807 = vpack.c.b16 %v763, %v761
    %v808 = vpack.c.b16 %v764, %v762
    %v809 = vpack.c.b16 %v767, %v765
    %v810 = vpack.c.b16 %v768, %v766
    %v811 = vpack.c.b16 %v771, %v769
    %v812 = vpack.c.b16 %v772, %v770
    %v813 = vpack.c.b16 %v775, %v773
    %v814 = vpack.c.b16 %v776, %v774
    %v815 = vpack.c.b16 %v779, %v777
    %v816 = vpack.c.b16 %v780, %v778
    %v817 = vpack.c.b16 %v783, %v781
    %v818 = vpack.c.b16 %v784, %v782
    %v819 = vpack.c.b16 %v787, %v785
    %v820 = vpack.c.b16 %v788, %v786
    %853 = vmatprep.subr.bf16.mxu0 %v790
    %854 = vmatpush1.bf16.msra.mxu0 %v789
    %855 = vmatprep.subr.bf16.mxu0 %v792
    %856 = vmatpush1.bf16.msra.mxu0 %v791
    %857 = vmatprep.subr.bf16.mxu0 %v794
    %858 = vmatpush1.bf16.msra.mxu0 %v793
    %859 = vmatprep.subr.bf16.mxu0 %v796
    %860 = vmatpush1.bf16.msra.mxu0 %v795
    %861 = vmatprep.subr.bf16.mxu0 %v798
    %862 = vmatpush1.bf16.msra.mxu0 %v797
    %863 = vmatprep.subr.bf16.mxu0 %v800
    %864 = vmatpush1.bf16.msra.mxu0 %v799
    %865 = vmatprep.subr.bf16.mxu0 %v802
    %866 = vmatpush1.bf16.msra.mxu0 %v801
    %867 = vmatprep.subr.bf16.mxu0 %v804
    %868 = vmatpush1.bf16.msra.mxu0 %v803
    %869 = vmatprep.subr.bf16.mxu0 %v806
    %870 = vmatpush1.bf16.msra.mxu0 %v805
    %871 = vmatprep.subr.bf16.mxu0 %v808
    %872 = vmatpush1.bf16.msra.mxu0 %v807
    %873 = vmatprep.subr.bf16.mxu0 %v810
    %874 = vmatpush1.bf16.msra.mxu0 %v809
    %875 = vmatprep.subr.bf16.mxu0 %v812
    %876 = vmatpush1.bf16.msra.mxu0 %v811
    %877 = vmatprep.subr.bf16.mxu0 %v814
    %878 = vmatpush1.bf16.msra.mxu0 %v813
    %879 = vmatprep.subr.bf16.mxu0 %v816
    %880 = vmatpush1.bf16.msra.mxu0 %v815
    %881 = vmatprep.subr.bf16.mxu0 %v818
    %882 = vmatpush1.bf16.msra.mxu0 %v817
    %883 = vmatprep.subr.bf16.mxu0 %v820
    %884 = vmatpush1.bf16.msra.mxu0 %v819
    %885 = vmatprep.mubr.bf16.mxu0 %v660
    %886 = vmatmul.mubr.bf16.gmra.mrb[0].mxu0 %v659
    %v887 = vpop.f32.mrb[0].mxu0
    %v888 = vadd.f32 0.0, %v887
    %v889 = vpop.f32.mrb[0].mxu0
    %v890 = vadd.f32 0.0, %v889
    %v891 = vpop.f32.mrb[0].mxu0
    %v892 = vpop.f32.mrb[0].mxu0
    %893 = vdwg.mxu0
    %s894 = scalar_lea.vmem %s5, 2
    %v895 = vld [vmem:[%s894] ss:$8 sm:$0x3]
    %s896 = scalar_lea.vmem %s5, 3
    %v897 = vld [vmem:[%s896] ss:$8 sm:$0x3]
    %v898 = vrot.slane %v888, 4
    %v899 = vadd.f32 %v888, %v898
    %v900 = vrot.slane %v899, 2
    %v901 = vadd.f32 %v899, %v900
    %v902 = vrot.slane %v901, 1
    %v903 = vadd.f32 %v901, %v902
    %v904 = vrot.slane %v890, 4
    %v905 = vadd.f32 %v890, %v904
    %v906 = vrot.slane %v905, 2
    %v907 = vadd.f32 %v905, %v906
    %v908 = vrot.slane %v907, 1
    %v909 = vadd.f32 %v907, %v908
    %v910 = vmul.f32 %v903, 0.125
    %v911 = vmul.f32 %v909, 0.125
    %v912 = vsub.f32 %v888, %v910
    %v913 = vsub.f32 %v890, %v911
    %v914 = vmul.f32 %v912, %v912
    %v915 = vmul.f32 %v913, %v913
    %v916 = vrot.slane %v914, 4
    %v917 = vadd.f32 %v914, %v916
    %v918 = vrot.slane %v917, 2
    %v919 = vadd.f32 %v917, %v918
    %v920 = vrot.slane %v919, 1
    %v921 = vadd.f32 %v919, %v920
    %v922 = vrot.slane %v915, 4
    %v923 = vadd.f32 %v915, %v922
    %v924 = vrot.slane %v923, 2
    %v925 = vadd.f32 %v923, %v924
    %v926 = vrot.slane %v925, 1
    %v927 = vadd.f32 %v925, %v926
    %v928 = vmul.f32 %v921, 0.125
    %v929 = vmul.f32 %v927, 0.125
    %v930 = vadd.f32 %v928, 1e-05
    %v931 = vadd.f32 %v929, 1e-05
    %v932 = vrsqrt.pop %v930
    %v933 = vrsqrt.pop %v931
    %v936 = vcombine.low %v932, %v933
    %v938 = vunpack.c.l.s4 1966171168
    %v939 = vunpack.c.0.s8 %v938
    %v940 = vlaneseq
    %v941 = vshrl.u32 %v940, 7
    %v942 = vsub.s32 %v939, %v941
    %v943 = vrot.slane %v936, %v942
    %v945 = vunpack.c.l.s4 1966171168
    %v946 = vunpack.c.0.s8 %v945
    %v947 = vlaneseq
    %v948 = vshrl.u32 %v947, 7
    %v949 = vsub.s32 %v946, %v948
    %v950 = vrot.slane %v943, %v949
    %v952 = vmul.f32 %v895, %v950
    %v954 = vlaneseq
    %v955 = vshrl.u32 %v954, 7
    %v956 = vsub.s32 0, %v955
    %v957 = vrot.slane %v952, %v956
    %v958 = vlaneseq
    %v959 = vshrl.u32 %v958, 7
    %v960 = vsub.s32 1, %v959
    %v961 = vrot.slane %v952, %v960
    %v964 = vmul.f32 %v912, %v957
    %v965 = vmul.f32 %v913, %v961
    %v967 = vlaneseq
    %v968 = vshrl.u32 %v967, 7
    %v969 = vsub.s32 0, %v968
    %v970 = vrot.slane %v897, %v969
    %v971 = vlaneseq
    %v972 = vshrl.u32 %v971, 7
    %v973 = vsub.s32 1, %v972
    %v974 = vrot.slane %v897, %v973
    %v977 = vadd.f32 %v964, %v970
    %v978 = vadd.f32 %v965, %v974
    %v979 = vmax.f32 %v977, 0.0
    %v980 = vmax.f32 %v978, 0.0
    %v981 = vpack.c.bf16 %v979, %v979
    %v982 = vpack.c.bf16 %v980, %v980
    %v983 = vld [vmem:[#allocation8] sm:$0xf]
    %v984 = vld [vmem:[#allocation8 + $0x4] sm:$0xf]
    %v985 = vld [vmem:[#allocation8 + $0x8] sm:$0xf]
    %v986 = vld [vmem:[#allocation8 + $0xc] sm:$0xf]
    %v987 = vld [vmem:[#allocation8 + $0x10] sm:$0xf]
    %v988 = vld [vmem:[#allocation8 + $0x14] sm:$0xf]
    %v989 = vld [vmem:[#allocation8 + $0x18] sm:$0xf]
    %v990 = vld [vmem:[#allocation8 + $0x1c] sm:$0xf]
    %v991 = vld [vmem:[#allocation8 + $0x20] sm:$0xf]
    %v992 = vld [vmem:[#allocation8 + $0x24] sm:$0xf]
    %v993 = vld [vmem:[#allocation8 + $0x28] sm:$0xf]
    %v994 = vld [vmem:[#allocation8 + $0x2c] sm:$0xf]
    %v995 = vld [vmem:[#allocation8 + $0x30] sm:$0xf]
    %v996 = vld [vmem:[#allocation8 + $0x34] sm:$0xf]
    %v997 = vld [vmem:[#allocation8 + $0x38] sm:$0xf]
    %v998 = vld [vmem:[#allocation8 + $0x3c] sm:$0xf]
    %v999 = vld [vmem:[#allocation8 + $0x40] sm:$0xf]
    %v1000 = vld [vmem:[#allocation8 + $0x44] sm:$0xf]
    %v1001 = vld [vmem:[#allocation8 + $0x48] sm:$0xf]
    %v1002 = vld [vmem:[#allocation8 + $0x4c] sm:$0xf]
    %v1003 = vld [vmem:[#allocation8 + $0x50] sm:$0xf]
    %v1004 = vld [vmem:[#allocation8 + $0x54] sm:$0xf]
    %v1005 = vld [vmem:[#allocation8 + $0x58] sm:$0xf]
    %v1006 = vld [vmem:[#allocation8 + $0x5c] sm:$0xf]
    %v1007 = vld [vmem:[#allocation8 + $0x60] sm:$0xf]
    %v1008 = vld [vmem:[#allocation8 + $0x64] sm:$0xf]
    %v1009 = vld [vmem:[#allocation8 + $0x68] sm:$0xf]
    %v1010 = vld [vmem:[#allocation8 + $0x6c] sm:$0xf]
    %v1011 = vld [vmem:[#allocation8 + $0x70] sm:$0xf]
    %v1012 = vld [vmem:[#allocation8 + $0x74] sm:$0xf]
    %v1013 = vld [vmem:[#allocation8 + $0x78] sm:$0xf]
    %v1014 = vld [vmem:[#allocation8 + $0x7c] sm:$0xf]
    %v1047 = vunpack.c.l.b16 %v983
    %v1048 = vunpack.c.l.b16 %v984
    %v1049 = vunpack.c.l.b16 %v985
    %v1050 = vunpack.c.l.b16 %v986
    %v1051 = vunpack.c.l.b16 %v987
    %v1052 = vunpack.c.l.b16 %v988
    %v1053 = vunpack.c.l.b16 %v989
    %v1054 = vunpack.c.l.b16 %v990
    %v1055 = vunpack.c.l.b16 %v991
    %v1056 = vunpack.c.l.b16 %v992
    %v1057 = vunpack.c.l.b16 %v993
    %v1058 = vunpack.c.l.b16 %v994
    %v1059 = vunpack.c.l.b16 %v995
    %v1060 = vunpack.c.l.b16 %v996
    %v1061 = vunpack.c.l.b16 %v997
    %v1062 = vunpack.c.l.b16 %v998
    %v1063 = vunpack.c.l.b16 %v999
    %v1064 = vunpack.c.l.b16 %v1000
    %v1065 = vunpack.c.l.b16 %v1001
    %v1066 = vunpack.c.l.b16 %v1002
    %v1067 = vunpack.c.l.b16 %v1003
    %v1068 = vunpack.c.l.b16 %v1004
    %v1069 = vunpack.c.l.b16 %v1005
    %v1070 = vunpack.c.l.b16 %v1006
    %v1071 = vunpack.c.l.b16 %v1007
    %v1072 = vunpack.c.l.b16 %v1008
    %v1073 = vunpack.c.l.b16 %v1009
    %v1074 = vunpack.c.l.b16 %v1010
    %v1075 = vunpack.c.l.b16 %v1011
    %v1076 = vunpack.c.l.b16 %v1012
    %v1077 = vunpack.c.l.b16 %v1013
    %v1078 = vunpack.c.l.b16 %v1014
    %v1079 = vpack.c.b16 %v1048, %v1047
    %v1080 = vpack.c.b16 %v1050, %v1049
    %v1081 = vpack.c.b16 %v1052, %v1051
    %v1082 = vpack.c.b16 %v1054, %v1053
    %v1083 = vpack.c.b16 %v1056, %v1055
    %v1084 = vpack.c.b16 %v1058, %v1057
    %v1085 = vpack.c.b16 %v1060, %v1059
    %v1086 = vpack.c.b16 %v1062, %v1061
    %v1087 = vpack.c.b16 %v1064, %v1063
    %v1088 = vpack.c.b16 %v1066, %v1065
    %v1089 = vpack.c.b16 %v1068, %v1067
    %v1090 = vpack.c.b16 %v1070, %v1069
    %v1091 = vpack.c.b16 %v1072, %v1071
    %v1092 = vpack.c.b16 %v1074, %v1073
    %v1093 = vpack.c.b16 %v1076, %v1075
    %v1094 = vpack.c.b16 %v1078, %v1077
    %1111 = vmatprep.subr.bf16.mxu0 0
    %1112 = vmatpush1.bf16.msra.mxu0 %v1079
    %1113 = vmatprep.subr.bf16.mxu0 0
    %1114 = vmatpush1.bf16.msra.mxu0 %v1080
    %1115 = vmatprep.subr.bf16.mxu0 0
    %1116 = vmatpush1.bf16.msra.mxu0 %v1081
    %1117 = vmatprep.subr.bf16.mxu0 0
    %1118 = vmatpush1.bf16.msra.mxu0 %v1082
    %1119 = vmatprep.subr.bf16.mxu0 0
    %1120 = vmatpush1.bf16.msra.mxu0 %v1083
    %1121 = vmatprep.subr.bf16.mxu0 0
    %1122 = vmatpush1.bf16.msra.mxu0 %v1084
    %1123 = vmatprep.subr.bf16.mxu0 0
    %1124 = vmatpush1.bf16.msra.mxu0 %v1085
    %1125 = vmatprep.subr.bf16.mxu0 0
    %1126 = vmatpush1.bf16.msra.mxu0 %v1086
    %1127 = vmatprep.subr.bf16.mxu0 0
    %1128 = vmatpush1.bf16.msra.mxu0 %v1087
    %1129 = vmatprep.subr.bf16.mxu0 0
    %1130 = vmatpush1.bf16.msra.mxu0 %v1088
    %1131 = vmatprep.subr.bf16.mxu0 0
    %1132 = vmatpush1.bf16.msra.mxu0 %v1089
    %1133 = vmatprep.subr.bf16.mxu0 0
    %1134 = vmatpush1.bf16.msra.mxu0 %v1090
    %1135 = vmatprep.subr.bf16.mxu0 0
    %1136 = vmatpush1.bf16.msra.mxu0 %v1091
    %1137 = vmatprep.subr.bf16.mxu0 0
    %1138 = vmatpush1.bf16.msra.mxu0 %v1092
    %1139 = vmatprep.subr.bf16.mxu0 0
    %1140 = vmatpush1.bf16.msra.mxu0 %v1093
    %1141 = vmatprep.subr.bf16.mxu0 0
    %1142 = vmatpush1.bf16.msra.mxu0 %v1094
    %1143 = vmatprep.mubr.bf16.mxu0 %v982
    %1144 = vmatmul.mubr.bf16.gmra.mrb[0].mxu0 %v981
    %v1145 = vpop.f32.mrb[0].mxu0
    %v1146 = vadd.f32 0.0, %v1145
    %v1147 = vpop.f32.mrb[0].mxu0
    %v1148 = vpop.f32.mrb[0].mxu0
    %v1149 = vpop.f32.mrb[0].mxu0
    %1150 = vdwg.mxu0
    %v1151 = vld [vmem:[%s5 + $0x4] ss:$0 sm:$0xff]
    %v1152 = vld [vmem:[%s5 + $0x5] ss:$0 sm:$0xff]
    %v1153 = vrot.slane %v1146, 4
    %v1154 = vadd.f32 %v1146, %v1153
    %v1155 = vrot.slane %v1154, 2
    %v1156 = vadd.f32 %v1154, %v1155
    %v1157 = vrot.slane %v1156, 1
    %v1158 = vadd.f32 %v1156, %v1157
    %v1159 = vmul.f32 %v1158, 0.125
    %v1160 = vsub.f32 %v1146, %v1159
    %v1161 = vmul.f32 %v1160, %v1160
    %v1162 = vrot.slane %v1161, 4
    %v1163 = vadd.f32 %v1161, %v1162
    %v1164 = vrot.slane %v1163, 2
    %v1165 = vadd.f32 %v1163, %v1164
    %v1166 = vrot.slane %v1165, 1
    %v1167 = vadd.f32 %v1165, %v1166
    %v1168 = vmul.f32 %v1167, 0.125
    %v1169 = vadd.f32 %v1168, 1e-05
    %v1170 = vrsqrt.pop %v1169
    %v1171 = vmul.f32 %v1151, %v1170
    %v1172 = vmul.f32 %v1160, %v1171
    %v1173 = vadd.f32 %v1172, %v1152
    %v1174 = vmax.f32 %v1173, 0.0
    %v1175 = vpack.c.bf16 %v1174, %v1174
    %v1176 = vld [vmem:[#allocation10] sm:$0xf]
    %v1177 = vld [vmem:[#allocation10 + $0x4] sm:$0xf]
    %v1178 = vld [vmem:[#allocation10 + $0x8] sm:$0xf]
    %v1179 = vld [vmem:[#allocation10 + $0xc] sm:$0xf]
    %v1180 = vld [vmem:[#allocation10 + $0x10] sm:$0xf]
    %v1181 = vld [vmem:[#allocation10 + $0x14] sm:$0xf]
    %v1182 = vld [vmem:[#allocation10 + $0x18] sm:$0xf]
    %v1183 = vld [vmem:[#allocation10 + $0x1c] sm:$0xf]
    %v1184 = vld [vmem:[#allocation10 + $0x20] sm:$0xf]
    %v1185 = vld [vmem:[#allocation10 + $0x24] sm:$0xf]
    %v1186 = vld [vmem:[#allocation10 + $0x28] sm:$0xf]
    %v1187 = vld [vmem:[#allocation10 + $0x2c] sm:$0xf]
    %v1188 = vld [vmem:[#allocation10 + $0x30] sm:$0xf]
    %v1189 = vld [vmem:[#allocation10 + $0x34] sm:$0xf]
    %v1190 = vld [vmem:[#allocation10 + $0x38] sm:$0xf]
    %v1191 = vld [vmem:[#allocation10 + $0x3c] sm:$0xf]
    %v1192 = vld [vmem:[%s5 + $0x6] ss:$0 sm:$0xff]
    %v1209 = vunpack.c.l.b16 %v1176
    %v1210 = vunpack.c.l.b16 %v1177
    %v1211 = vunpack.c.l.b16 %v1178
    %v1212 = vunpack.c.l.b16 %v1179
    %v1213 = vunpack.c.l.b16 %v1180
    %v1214 = vunpack.c.l.b16 %v1181
    %v1215 = vunpack.c.l.b16 %v1182
    %v1216 = vunpack.c.l.b16 %v1183
    %v1217 = vunpack.c.l.b16 %v1184
    %v1218 = vunpack.c.l.b16 %v1185
    %v1219 = vunpack.c.l.b16 %v1186
    %v1220 = vunpack.c.l.b16 %v1187
    %v1221 = vunpack.c.l.b16 %v1188
    %v1222 = vunpack.c.l.b16 %v1189
    %v1223 = vunpack.c.l.b16 %v1190
    %v1224 = vunpack.c.l.b16 %v1191
    %v1225 = vpack.c.b16 %v1210, %v1209
    %v1226 = vpack.c.b16 %v1212, %v1211
    %v1227 = vpack.c.b16 %v1214, %v1213
    %v1228 = vpack.c.b16 %v1216, %v1215
    %v1229 = vpack.c.b16 %v1218, %v1217
    %v1230 = vpack.c.b16 %v1220, %v1219
    %v1231 = vpack.c.b16 %v1222, %v1221
    %v1232 = vpack.c.b16 %v1224, %v1223
    %1241 = vmatprep.subr.bf16.mxu0 0
    %1242 = vmatpush1.bf16.msra.mxu0 %v1225
    %1243 = vmatprep.subr.bf16.mxu0 0
    %1244 = vmatpush1.bf16.msra.mxu0 %v1226
    %1245 = vmatprep.subr.bf16.mxu0 0
    %1246 = vmatpush1.bf16.msra.mxu0 %v1227
    %1247 = vmatprep.subr.bf16.mxu0 0
    %1248 = vmatpush1.bf16.msra.mxu0 %v1228
    %1249 = vmatprep.subr.bf16.mxu0 0
    %1250 = vmatpush1.bf16.msra.mxu0 %v1229
    %1251 = vmatprep.subr.bf16.mxu0 0
    %1252 = vmatpush1.bf16.msra.mxu0 %v1230
    %1253 = vmatprep.subr.bf16.mxu0 0
    %1254 = vmatpush1.bf16.msra.mxu0 %v1231
    %1255 = vmatprep.subr.bf16.mxu0 0
    %1256 = vmatpush1.bf16.msra.mxu0 %v1232
    %1257 = vmatprep.subr.bf16.mxu0 0
    %1258 = vmatpush1.bf16.msra.mxu0 0
    %1259 = vmatprep.subr.bf16.mxu0 0
    %1260 = vmatpush1.bf16.msra.mxu0 0
    %1261 = vmatprep.subr.bf16.mxu0 0
    %1262 = vmatpush1.bf16.msra.mxu0 0
    %1263 = vmatprep.subr.bf16.mxu0 0
    %1264 = vmatpush1.bf16.msra.mxu0 0
    %1265 = vmatprep.subr.bf16.mxu0 0
    %1266 = vmatpush1.bf16.msra.mxu0 0
    %1267 = vmatprep.subr.bf16.mxu0 0
    %1268 = vmatpush1.bf16.msra.mxu0 0
    %1269 = vmatprep.subr.bf16.mxu0 0
    %1270 = vmatpush1.bf16.msra.mxu0 0
    %1271 = vmatprep.subr.bf16.mxu0 0
    %1272 = vmatpush1.bf16.msra.mxu0 0
    %1273 = vmatprep.mubr.bf16.mxu0 0
    %1274 = vmatmul.mubr.bf16.gmra.mrb[0].mxu0 %v1175
    %v1275 = vpop.f32.mrb[0].mxu0
    %v1276 = vadd.f32 %v1192, %v1275
    %v1277 = vpop.f32.mrb[0].mxu0
    %v1278 = vpop.f32.mrb[0].mxu0
    %v1279 = vpop.f32.mrb[0].mxu0
    %1280 = vdwg.mxu0
    %1281 = vst [vmem:[#allocation11] sm:$0xff] %v1276
    // Predicated region
    $region46: #{tpu_custom_call.1} parent=1 // pred_check
      _
    $region47: #{tpu_custom_call.1} parent=1 // pred_check_branch
      %1283 = sbr.rel (0) target = $region49
    $region48: #{tpu_custom_call.1} parent=1 // pred_region
      %s1285 = ssub.s32 128, 128
      %1286 = vsyncadd [#allocation4], %s1285
      %s1288 = sshll.u32 [#allocation11], 4
      %s1289 = int_to_ptr.vmem [resolvable:$true] %s1288
      %1291 = dma.vmem_to_hbm [thread:$0]  %s1289, 128, %s6, [#allocation4]
    $region49: #{tpu_custom_call.1} parent=1 // pred_fallthru
      _
    // Predicated region
    $region50: #{tpu_custom_call.1} parent=1 // pred_check
      _
    $region51: #{tpu_custom_call.1} parent=1 // pred_check_branch
      %1293 = sbr.rel (0) target = $region53
    $region52: #{tpu_custom_call.1} parent=1 // pred_region
      %1294 = dma.done [#allocation4], 128
    $region53: #{tpu_custom_call.1} parent=1 // pred_fallthru
      _
    %1295 = vsyncpa [#allocation3], 1
    %1296 = vsyncpa [#allocation6], 1
    %1297 = vsyncpa [#allocation9], 1
    %1298 = vsyncpa [#allocation4], 1

</llo_original>
